<compile_context>
chip_gen: v5e
topology: v5e:2x2
jax: 0.10.0
libtpu: 0.0.40
codegen_flags: <defaults>
</compile_context>

<pallas_src>
import functools

import jax
import jax.numpy as jnp
from jax.experimental import pallas as pl
from jax.experimental.pallas import tpu as pltpu


def _mlp_kernel(x_ref, w1_ref, b1_ref, w2_ref, b2_ref, o_ref):
    # x arrives in f32 straight from HBM (no wrapper-side cast/pad pass);
    # cast to bf16 here so both matmuls run at the bf16 MXU rate with f32 acc.
    xb = x_ref[...].astype(jnp.bfloat16)
    h = jnp.dot(xb, w1_ref[...], preferred_element_type=jnp.float32)
    h = jnp.maximum(h + b1_ref[...], 0.0)            # f32 epilogue (v5e-friendly)
    # dropout: inference mode -> identity (no-op)
    out = jnp.dot(h.astype(jnp.bfloat16), w2_ref[...],
                  preferred_element_type=jnp.float32)
    o_ref[...] = (out + b2_ref[...]).astype(o_ref.dtype)


def _pick_block_m(batch, max_block=512):
    """Fewer, fatter grid steps; keep grid_m >= 2 (ideally even) for v7x's 2 TCs."""
    if batch > max_block:
        return max_block                      # e.g. B=1024 -> 512 -> grid of 2
    half = -(-batch // 2)                     # cdiv(batch, 2)
    half8 = -(-half // 8) * 8                 # round up to sublane multiple
    if batch > 8 and half8 < batch:
        return half8                          # two blocks, block_m % 8 == 0
    return batch                              # single full-extent block (tiny B)


@functools.partial(jax.jit, static_argnames=("block_m", "out_dtype"))
def ffn_forward(x, w1, b1, w2, b2, *, block_m=None, out_dtype=jnp.float32):
    """relu(x @ W1 + b1) @ W2 + b2 (dropout = identity, eval() mode).

    x stays f32 in HBM and is cast to bf16 in-kernel; weights should be passed
    as bf16 (cast once outside jit). Ragged batches are handled by Pallas's
    partial-block machinery (no host-side padding or output slicing).
    """
    B, D_in = x.shape
    H = w1.shape[1]
    O = w2.shape[1]

    if block_m is None:
        block_m = _pick_block_m(B)
    grid_m = -(-B // block_m)                 # pl.cdiv(B, block_m)

    # Weights in bf16 once per call only if the caller handed f32.
    w1b = w1 if w1.dtype == jnp.bfloat16 else w1.astype(jnp.bfloat16)
    w2b = w2 if w2.dtype == jnp.bfloat16 else w2.astype(jnp.bfloat16)
    b1f = b1.reshape(1, H).astype(jnp.float32)
    b2f = b2.reshape(1, O).astype(jnp.float32)

    flops = 2 * B * (D_in * H + H * O)
    bytes_accessed = (
        x.size * x.dtype.itemsize
        + w1b.size * 2 + w2b.size * 2
        + b1f.size * 4 + b2f.size * 4
        + B * O * jnp.dtype(out_dtype).itemsize
    )

    return pl.pallas_call(
        _mlp_kernel,
        out_shape=jax.ShapeDtypeStruct((B, O), out_dtype),
        grid_spec=pltpu.PrefetchScalarGridSpec(
            num_scalar_prefetch=0,
            grid=(grid_m,),
            in_specs=[
                pl.BlockSpec((block_m, D_in), lambda i: (i, 0)),   # x tile (f32)
                # Constant index_maps -> resident, not re-DMAed per step.
                pl.BlockSpec((D_in, H), lambda i: (0, 0)),         # W1 (bf16)
                pl.BlockSpec((1, H), lambda i: (0, 0)),            # b1 (f32)
                pl.BlockSpec((H, O), lambda i: (0, 0)),            # W2 (bf16)
                pl.BlockSpec((1, O), lambda i: (0, 0)),            # b2 (f32)
            ],
            out_specs=pl.BlockSpec((block_m, O), lambda i: (i, 0)),
        ),
        compiler_params=pltpu.CompilerParams(
            dimension_semantics=("parallel",),
        ),
        cost_estimate=pl.CostEstimate(
            flops=flops, transcendentals=0, bytes_accessed=bytes_accessed),
    )(x, w1b, b1f, w2b, b2f)


def _ref_forward(x, w1, b1, w2, b2):
    # Pure-JAX reference mirroring the kernel's bf16-operand / f32-accumulate
    # datapath (dropout is identity in eval()). Note: bf16 operands introduce
    # ~1e-2 relative error vs a pure-f32 PyTorch reference.
    f32 = jnp.float32
    xb = x.astype(jnp.bfloat16).astype(f32)
    w1b = w1.astype(jnp.bfloat16).astype(f32)
    w2b = w2.astype(jnp.bfloat16).astype(f32)
    h = jnp.maximum(xb @ w1b + b1.reshape(1, -1).astype(f32), 0.0)
    hb = h.astype(jnp.bfloat16).astype(f32)
    return hb @ w2b + b2.reshape(1, -1).astype(f32)


if __name__ == "__main__":
    # Shapes consistent with the module's hyperparameters:
    #   ARGS.inputdim=256, ARGS.hiddenDimSize=128, ARGS.numberOfOutputCodes=128
    batch = 1024            # auto block_m=512 -> exactly 2 grid steps (v7x-friendly)
    inputdim = 256
    hidden_dim = 128
    num_out_codes = 128

    key = jax.random.PRNGKey(0)
    kx, kw1, kb1, kw2, kb2 = jax.random.split(key, 5)

    x = jax.random.normal(kx, (batch, inputdim), dtype=jnp.float32)

    # Deterministic synthetic parameters (uniform, roughly matching PyTorch's
    # default nn.Linear init scale: U(-1/sqrt(fan_in), 1/sqrt(fan_in))).
    s1 = 1.0 / jnp.sqrt(jnp.float32(inputdim))
    s2 = 1.0 / jnp.sqrt(jnp.float32(hidden_dim))
    w1 = jax.random.uniform(kw1, (inputdim, hidden_dim), jnp.float32, -s1, s1)
    b1 = jax.random.uniform(kb1, (1, hidden_dim), jnp.float32, -s1, s1)
    w2 = jax.random.uniform(kw2, (hidden_dim, num_out_codes), jnp.float32, -s2, s2)
    b2 = jax.random.uniform(kb2, (1, num_out_codes), jnp.float32, -s2, s2)

    # Cast weights to bf16 once, outside jit (serving-style parameter tree).
    w1b = w1.astype(jnp.bfloat16)
    w2b = w2.astype(jnp.bfloat16)

    # TODO(synk): train-mode dropout (RNG mask + 1/(1-p) scale) not implemented;
    # this kernel matches the module in eval() mode.

    out = jax.block_until_ready(ffn_forward(x, w1b, b1, w2, b2))
    ref = _ref_forward(x, w1, b1, w2, b2)
    assert out.shape == (batch, num_out_codes)
    assert out.dtype == jnp.float32
    assert jnp.allclose(out, ref, atol=2e-2, rtol=2e-2)

    # Ragged batch (not a multiple of block_m): Pallas partial-last-block path.
    x_r = x[:1000]
    out_r = jax.block_until_ready(ffn_forward(x_r, w1b, b1, w2, b2))
    ref_r = _ref_forward(x_r, w1, b1, w2, b2)
    assert out_r.shape == (1000, num_out_codes)
    assert jnp.allclose(out_r, ref_r, atol=2e-2, rtol=2e-2)

    # Optional bf16 output (halves writeback traffic on this mem-bound shape).
    out_bf = jax.block_until_ready(
        ffn_forward(x, w1b, b1, w2, b2, out_dtype=jnp.bfloat16))
    assert out_bf.dtype == jnp.bfloat16
    assert jnp.allclose(out_bf.astype(jnp.float32), ref, atol=8e-2, rtol=8e-2)

    print("KERNEL_OK")
</pallas_src>

<mosaic_0001>
module attributes {stable_mosaic.version = 11 : i64} {
  func.func @_mlp_kernel(%arg0: i32, %arg1: memref<512x256xf32, #tpu.memory_space<vmem>>, %arg2: memref<256x128xbf16, #tpu.memory_space<vmem>>, %arg3: memref<1x128xf32, #tpu.memory_space<vmem>>, %arg4: memref<128x128xbf16, #tpu.memory_space<vmem>>, %arg5: memref<1x128xf32, #tpu.memory_space<vmem>>, %arg6: memref<512x128xf32, #tpu.memory_space<vmem>>) attributes {dimension_semantics = [#tpu.dimension_semantics<parallel>], iteration_bounds = array<i64: 2>, scalar_prefetch = 0 : i64, scratch_operands = 0 : i64, tpu.core_type = #tpu.core_type<tc>, window_params = [{transform_indices = @transform_0, window_bounds = array<i64: 512, 256>}, {pipeline_mode = #tpu.pipeline_mode<synchronous>, transform_indices = @transform_1, window_bounds = array<i64: 256, 128>}, {pipeline_mode = #tpu.pipeline_mode<synchronous>, transform_indices = @transform_2, window_bounds = array<i64: 1, 128>}, {pipeline_mode = #tpu.pipeline_mode<synchronous>, transform_indices = @transform_3, window_bounds = array<i64: 128, 128>}, {pipeline_mode = #tpu.pipeline_mode<synchronous>, transform_indices = @transform_4, window_bounds = array<i64: 1, 128>}, {transform_indices = @transform_5, window_bounds = array<i64: 512, 128>}]} {
    %c0 = arith.constant 0 : index
    %c0_0 = arith.constant 0 : index
    %0 = vector.load %arg1[%c0, %c0_0] : memref<512x256xf32, #tpu.memory_space<vmem>>, vector<512x256xf32>
    %1 = arith.truncf %0 : vector<512x256xf32> to vector<512x256xbf16>
    %c0_1 = arith.constant 0 : index
    %c0_2 = arith.constant 0 : index
    %2 = vector.load %arg2[%c0_1, %c0_2] : memref<256x128xbf16, #tpu.memory_space<vmem>>, vector<256x128xbf16>
    %cst = arith.constant dense<0.000000e+00> : vector<512x128xf32>
    %3 = tpu.matmul %1, %2, %cst {dimension_numbers = #tpu.dot_dimension_numbers<[1], [0], [0], [1], [0, 0, 1, 1], [], []>} : vector<512x256xbf16>, vector<256x128xbf16>, vector<512x128xf32> -> vector<512x128xf32>
    %c0_3 = arith.constant 0 : index
    %c0_4 = arith.constant 0 : index
    %4 = vector.load %arg3[%c0_3, %c0_4] : memref<1x128xf32, #tpu.memory_space<vmem>>, vector<1x128xf32>
    %5 = vector.broadcast %4 : vector<1x128xf32> to vector<512x128xf32>
    %6 = arith.addf %3, %5 : vector<512x128xf32>
    %cst_5 = arith.constant 0.000000e+00 : f32
    %7 = vector.broadcast %cst_5 : f32 to vector<512x128xf32>
    %8 = arith.maximumf %6, %7 : vector<512x128xf32>
    %9 = arith.truncf %8 : vector<512x128xf32> to vector<512x128xbf16>
    %c0_6 = arith.constant 0 : index
    %c0_7 = arith.constant 0 : index
    %10 = vector.load %arg4[%c0_6, %c0_7] : memref<128x128xbf16, #tpu.memory_space<vmem>>, vector<128x128xbf16>
    %cst_8 = arith.constant dense<0.000000e+00> : vector<512x128xf32>
    %11 = tpu.matmul %9, %10, %cst_8 {dimension_numbers = #tpu.dot_dimension_numbers<[1], [0], [0], [1], [0, 0, 1, 1], [], []>} : vector<512x128xbf16>, vector<128x128xbf16>, vector<512x128xf32> -> vector<512x128xf32>
    %c0_9 = arith.constant 0 : index
    %c0_10 = arith.constant 0 : index
    %12 = vector.load %arg5[%c0_9, %c0_10] : memref<1x128xf32, #tpu.memory_space<vmem>>, vector<1x128xf32>
    %13 = vector.broadcast %12 : vector<1x128xf32> to vector<512x128xf32>
    %14 = arith.addf %11, %13 : vector<512x128xf32>
    %c0_11 = arith.constant 0 : index
    %c0_12 = arith.constant 0 : index
    %15 = vector.load %arg6[%c0_11, %c0_12] : memref<512x128xf32, #tpu.memory_space<vmem>>, vector<512x128xf32>
    tpu.vector_store %arg6[%c0_11, %c0_12], %14 {strides = array<i32>} : memref<512x128xf32, #tpu.memory_space<vmem>>, vector<512x128xf32>,
    return
  }
  func.func @transform_0(%arg0: i32) -> (i32, i32) {
    %c0_i32 = arith.constant 0 : i32
    %c0_i32_0 = arith.constant 0 : i32
    return %arg0, %c0_i32 : i32, i32
  }
  func.func @transform_1(%arg0: i32) -> (i32, i32) {
    %c0_i32 = arith.constant 0 : i32
    %c0_i32_0 = arith.constant 0 : i32
    %c0_i32_1 = arith.constant 0 : i32
    return %c0_i32, %c0_i32_0 : i32, i32
  }
  func.func @transform_2(%arg0: i32) -> (i32, i32) {
    %c0_i32 = arith.constant 0 : i32
    %c0_i32_0 = arith.constant 0 : i32
    %c0_i32_1 = arith.constant 0 : i32
    return %c0_i32, %c0_i32_0 : i32, i32
  }
  func.func @transform_3(%arg0: i32) -> (i32, i32) {
    %c0_i32 = arith.constant 0 : i32
    %c0_i32_0 = arith.constant 0 : i32
    %c0_i32_1 = arith.constant 0 : i32
    return %c0_i32, %c0_i32_0 : i32, i32
  }
  func.func @transform_4(%arg0: i32) -> (i32, i32) {
    %c0_i32 = arith.constant 0 : i32
    %c0_i32_0 = arith.constant 0 : i32
    %c0_i32_1 = arith.constant 0 : i32
    return %c0_i32, %c0_i32_0 : i32, i32
  }
  func.func @transform_5(%arg0: i32) -> (i32, i32) {
    %c0_i32 = arith.constant 0 : i32
    %c0_i32_0 = arith.constant 0 : i32
    return %arg0, %c0_i32 : i32, i32
  }
}

</mosaic_0001>

<llo_original>
// kernel: ffn_forward.1
$region0: #{ffn_forward.1}
  #allocation0 [shape = 'u32[]', space=smem, size = 0x4, offset = 0x4, fixed_abs, tag = 'smem constant byte address 0x4 - core index']
  #allocation1 [shape = 'u32[72,128]{1,0:T(1,128)}', space=vmem, size = 0x9000, scoped, tag = 'internal scratch']
  %s0 = inlined_call_operand.hbm [shape: f32[1024,256], index: 0, kind: input, shape index: {}]
  %s1 = inlined_call_operand.vmem [shape: bf16[256,128], index: 1, kind: input, shape index: {}]
  %s2 = inlined_call_operand.vmem [shape: f32[1,128], index: 2, kind: input, shape index: {}]
  %s3 = inlined_call_operand.vmem [shape: bf16[128,128], index: 3, kind: input, shape index: {}]
  %s4 = inlined_call_operand.vmem [shape: f32[1,128], index: 4, kind: input, shape index: {}]
  %s5 = inlined_call_operand.hbm [shape: f32[1024,128], index: 5, kind: output, shape index: {}]
  %s6 = sld [smem:[#allocation0]]
  $region57: #{ffn_forward.1} parent=0
    _
  %s8 = ssub.s32 1, %s6
  %s9 = scalar_select 0, %s8, %s6
  $region1: #{ffn_forward.1} parent=0
    #allocation2 [shape = 'u8[1048576]{0}', space=vmem, size = 0x100000, scoped, tag = 'input window, operand 0']
    #allocation3 [shape = 's32[2]{0}', space=sflag, size = 0x8, scoped, tag = 'scoped memory for ffn_forward.1']
    #allocation4 [shape = 's32[2]{0}', space=sflag, size = 0x8, scoped, tag = 'scoped memory for ffn_forward.1']
    #allocation5 [shape = 'u8[524288]{0}', space=vmem, size = 0x80000, scoped, tag = 'output window, operand 0']
    %10 = vsyncpa [#allocation3], 0
    %s11 = scalar_lea.sflag [#allocation3], 1
    %12 = vsyncpa %s11, 0
    %13 = vsyncpa [#allocation4], 0
    %s14 = scalar_lea.sflag [#allocation4], 1
    %15 = vsyncpa %s14, 0
    loop: start=0, step=1, limit=4
    $region2: #{ffn_forward.1} parent=1 // loop_pre_header
      _
    $region3: #{ffn_forward.1} parent=1 // loop_header
      %s17 = sphi 0, %s21
      %p18 = scmp.ge.s32.totalorder %s17, 4
      %s27 = sphi 0, %s29
      %s30 = sphi 0, %s27
      %s31 = sphi 0, %s30
      %s47 = sphi 0, %s31
      %s51 = sphi 0, %s51
      %s53 = sphi 0, %s51
      %s54 = sphi 0, %s53
      %s68 = sphi 0, %s54
      %s72 = sphi 0, %s72
      %s74 = sphi 0, %s72
      %s75 = sphi 0, %s74
      %s89 = sphi 0, %s75
      %s93 = sphi 0, %s93
      %s95 = sphi 0, %s93
      %s96 = sphi 0, %s95
      %s110 = sphi 0, %s96
      %s114 = sphi 0, %s114
      %s116 = sphi 0, %s114
      %s117 = sphi 0, %s116
      %s131 = sphi 0, %s117
      %s137 = sphi 0, %s139
      %s140 = sphi 0, %s137
      %s141 = sphi 0, %s140
      %s157 = sphi 0, %s141
    $region4: #{ffn_forward.1} parent=1 // loop_header_branch
      %20 = sbr.rel (%p18) target = $region8
    $region5: #{ffn_forward.1} parent=1 // loop_body
      %s22 = ssub.s32 %s17, 1
      %s23 = ssub.s32 %s17, 2
      %s24 = sadd.s32 %s17, 1
      %s25 = ssub.s32 %s17, %s24
      %p26 = scmp.eq.s32.totalorder %s25, 0
      %s28 = sadd.s32 %s27, 1
      %s29 = scalar_select %p26, %s27, %s28
      %p32 = pneg %p26
      %p33 = scmp.eq.s32.totalorder %s17, 1
      %p34 = por %p32, %p33
      %p35 = scmp.ne.s32.totalorder %s27, %s30
      %p36 = scmp.eq.s32.totalorder %s17, 0
      %p37 = por %p35, %p36
      %p38 = scmp.ne.s32.totalorder %s27, %s30
      %p39 = scmp.eq.s32.totalorder %s22, 1
      %p40 = por %p38, %p39
      %p41 = scmp.ne.s32.totalorder %s30, %s31
      %p42 = scmp.eq.s32.totalorder %s22, 0
      %p43 = por %p41, %p42
      %p44 = scmp.ne.s32.totalorder %s30, %s31
      %p45 = scmp.eq.s32.totalorder %s23, 1
      %p46 = por %p44, %p45
      %p48 = scmp.ne.s32.totalorder %s31, %s47
      %p49 = scmp.eq.s32.totalorder %s23, 0
      %p50 = por %p48, %p49
      %s52 = sadd.s32 %s51, 1
      %p55 = scmp.eq.s32.totalorder %s17, 1
      %p56 = scmp.ne.s32.totalorder %s51, %s53
      %p57 = scmp.eq.s32.totalorder %s17, 0
      %p58 = por %p56, %p57
      %p59 = scmp.ne.s32.totalorder %s51, %s53
      %p60 = scmp.eq.s32.totalorder %s22, 1
      %p61 = por %p59, %p60
      %p62 = scmp.ne.s32.totalorder %s53, %s54
      %p63 = scmp.eq.s32.totalorder %s22, 0
      %p64 = por %p62, %p63
      %p65 = scmp.ne.s32.totalorder %s53, %s54
      %p66 = scmp.eq.s32.totalorder %s23, 1
      %p67 = por %p65, %p66
      %p69 = scmp.ne.s32.totalorder %s54, %s68
      %p70 = scmp.eq.s32.totalorder %s23, 0
      %p71 = por %p69, %p70
      %s73 = sadd.s32 %s72, 1
      %p76 = scmp.eq.s32.totalorder %s17, 1
      %p77 = scmp.ne.s32.totalorder %s72, %s74
      %p78 = scmp.eq.s32.totalorder %s17, 0
      %p79 = por %p77, %p78
      %p80 = scmp.ne.s32.totalorder %s72, %s74
      %p81 = scmp.eq.s32.totalorder %s22, 1
      %p82 = por %p80, %p81
      %p83 = scmp.ne.s32.totalorder %s74, %s75
      %p84 = scmp.eq.s32.totalorder %s22, 0
      %p85 = por %p83, %p84
      %p86 = scmp.ne.s32.totalorder %s74, %s75
      %p87 = scmp.eq.s32.totalorder %s23, 1
      %p88 = por %p86, %p87
      %p90 = scmp.ne.s32.totalorder %s75, %s89
      %p91 = scmp.eq.s32.totalorder %s23, 0
      %p92 = por %p90, %p91
      %s94 = sadd.s32 %s93, 1
      %p97 = scmp.eq.s32.totalorder %s17, 1
      %p98 = scmp.ne.s32.totalorder %s93, %s95
      %p99 = scmp.eq.s32.totalorder %s17, 0
      %p100 = por %p98, %p99
      %p101 = scmp.ne.s32.totalorder %s93, %s95
      %p102 = scmp.eq.s32.totalorder %s22, 1
      %p103 = por %p101, %p102
      %p104 = scmp.ne.s32.totalorder %s95, %s96
      %p105 = scmp.eq.s32.totalorder %s22, 0
      %p106 = por %p104, %p105
      %p107 = scmp.ne.s32.totalorder %s95, %s96
      %p108 = scmp.eq.s32.totalorder %s23, 1
      %p109 = por %p107, %p108
      %p111 = scmp.ne.s32.totalorder %s96, %s110
      %p112 = scmp.eq.s32.totalorder %s23, 0
      %p113 = por %p111, %p112
      %s115 = sadd.s32 %s114, 1
      %p118 = scmp.eq.s32.totalorder %s17, 1
      %p119 = scmp.ne.s32.totalorder %s114, %s116
      %p120 = scmp.eq.s32.totalorder %s17, 0
      %p121 = por %p119, %p120
      %p122 = scmp.ne.s32.totalorder %s114, %s116
      %p123 = scmp.eq.s32.totalorder %s22, 1
      %p124 = por %p122, %p123
      %p125 = scmp.ne.s32.totalorder %s116, %s117
      %p126 = scmp.eq.s32.totalorder %s22, 0
      %p127 = por %p125, %p126
      %p128 = scmp.ne.s32.totalorder %s116, %s117
      %p129 = scmp.eq.s32.totalorder %s23, 1
      %p130 = por %p128, %p129
      %p132 = scmp.ne.s32.totalorder %s117, %s131
      %p133 = scmp.eq.s32.totalorder %s23, 0
      %p134 = por %p132, %p133
      %s135 = ssub.s32 %s17, %s24
      %p136 = scmp.eq.s32.totalorder %s135, 0
      %s138 = sadd.s32 %s137, 1
      %s139 = scalar_select %p136, %s137, %s138
      %p142 = pneg %p136
      %p143 = scmp.eq.s32.totalorder %s17, 1
      %p144 = por %p142, %p143
      %p145 = scmp.ne.s32.totalorder %s137, %s140
      %p146 = scmp.eq.s32.totalorder %s17, 0
      %p147 = por %p145, %p146
      %p148 = scmp.ne.s32.totalorder %s137, %s140
      %p149 = scmp.eq.s32.totalorder %s22, 1
      %p150 = por %p148, %p149
      %p151 = scmp.ne.s32.totalorder %s140, %s141
      %p152 = scmp.eq.s32.totalorder %s22, 0
      %p153 = por %p151, %p152
      %p154 = scmp.ne.s32.totalorder %s140, %s141
      %p155 = scmp.eq.s32.totalorder %s23, 1
      %p156 = por %p154, %p155
      %p158 = scmp.ne.s32.totalorder %s141, %s157
      %p159 = scmp.eq.s32.totalorder %s23, 0
      %p160 = por %p158, %p159
      %p161 = scmp.le.s32.totalorder 1, %s17
      %p162 = scmp.lt.s32.totalorder %s17, 3
      %p163 = pnand %p161, %p162
      %p164 = pneg %p163
      // Predicated region
      $region9: #{ffn_forward.1} parent=5 // pred_check
        _
      $region10: #{ffn_forward.1} parent=5 // pred_check_branch
        %166 = sbr.rel (%p163) target = $region12
      $region11: #{ffn_forward.1} parent=5 // pred_region
        %s167 = ssub.s32 %s17, 1
        // Predicated region
        $region13: #{ffn_forward.1} parent=11 // pred_check
          %p168 = pneg %p64
        $region14: #{ffn_forward.1} parent=11 // pred_check_branch
          %170 = sbr.rel (%p168) target = $region16
        $region15: #{ffn_forward.1} parent=11 // pred_region
          _
        $region16: #{ffn_forward.1} parent=11 // pred_fallthru
          _
        // Predicated region
        $region17: #{ffn_forward.1} parent=11 // pred_check
          %p171 = pneg %p85
        $region18: #{ffn_forward.1} parent=11 // pred_check_branch
          %173 = sbr.rel (%p171) target = $region20
        $region19: #{ffn_forward.1} parent=11 // pred_region
          _
        $region20: #{ffn_forward.1} parent=11 // pred_fallthru
          _
        // Predicated region
        $region21: #{ffn_forward.1} parent=11 // pred_check
          %p174 = pneg %p106
        $region22: #{ffn_forward.1} parent=11 // pred_check_branch
          %176 = sbr.rel (%p174) target = $region24
        $region23: #{ffn_forward.1} parent=11 // pred_region
          _
        $region24: #{ffn_forward.1} parent=11 // pred_fallthru
          _
        // Predicated region
        $region25: #{ffn_forward.1} parent=11 // pred_check
          %p177 = pneg %p127
        $region26: #{ffn_forward.1} parent=11 // pred_check_branch
          %179 = sbr.rel (%p177) target = $region28
        $region27: #{ffn_forward.1} parent=11 // pred_region
          _
        $region28: #{ffn_forward.1} parent=11 // pred_fallthru
          _
      $region12: #{ffn_forward.1} parent=5 // pred_fallthru
        _
      %p180 = scmp.lt.s32.totalorder %s17, 2
      // Predicated region
      $region29: #{ffn_forward.1} parent=5 // pred_check
        %p181 = pneg %p180
      $region30: #{ffn_forward.1} parent=5 // pred_check_branch
        %183 = sbr.rel (%p181) target = $region32
      $region31: #{ffn_forward.1} parent=5 // pred_region
        // Predicated region
        $region33: #{ffn_forward.1} parent=31 // pred_check
          %p184 = pneg %p37
        $region34: #{ffn_forward.1} parent=31 // pred_check_branch
          %186 = sbr.rel (%p184) target = $region36
        $region35: #{ffn_forward.1} parent=31 // pred_region
          %s187 = sand.u32 %s27, 1
          %s188 = scalar_lea.sflag [#allocation3], %s187
          %s189 = sand.u32 %s27, 1
          %s190 = smul.addr %s189, 1024
          %s191 = scalar_lea.vmem [#allocation2], %s190
          %s192 = smul.u32 64, %s17
          %194 = vsyncadd %s188, 0
          %s195 = smul.addr %s192, 2
          %s196 = smul.addr %s195, 8
          %s197 = scalar_lea.hbm %s0, %s196
          %s198 = sshll.u32 %s197, 4
          %s199 = int_to_ptr.hbm [resolvable:$true] %s198
          %s200 = sshll.u32 %s191, 4
          %s201 = int_to_ptr.vmem [resolvable:$true] %s200
          %206 = dma.hbm_to_vmem [thread:$0]  %s199, 16384, %s201, %s188, 256, 256, 16
        $region36: #{ffn_forward.1} parent=31 // pred_fallthru
          _
      $region32: #{ffn_forward.1} parent=5 // pred_fallthru
        _
      %p207 = scmp.le.s32.totalorder 1, %s17
      %p208 = scmp.lt.s32.totalorder %s17, 3
      %p209 = pnand %p207, %p208
      %p210 = pneg %p209
      // Predicated region
      $region37: #{ffn_forward.1} parent=5 // pred_check
        _
      $region38: #{ffn_forward.1} parent=5 // pred_check_branch
        %212 = sbr.rel (%p209) target = $region40
      $region39: #{ffn_forward.1} parent=5 // pred_region
        %s213 = ssub.s32 %s17, 1
        %s214 = sand.u32 %s30, 1
        %s215 = scalar_lea.sflag [#allocation3], %s214
        %s216 = sand.u32 %s30, 1
        %s217 = smul.addr %s216, 1024
        %s218 = scalar_lea.vmem [#allocation2], %s217
        // Predicated region
        $region41: #{ffn_forward.1} parent=39 // pred_check
          %p219 = pneg %p43
        $region42: #{ffn_forward.1} parent=39 // pred_check_branch
          %221 = sbr.rel (%p219) target = $region44
        $region43: #{ffn_forward.1} parent=39 // pred_region
          %223 = dma.done %s215, 16384
        $region44: #{ffn_forward.1} parent=39 // pred_fallthru
          _
        %s224 = sand.u32 %s30, 1
        %s225 = scalar_lea.sflag [#allocation3], %s224
        %s226 = sand.u32 %s30, 1
        %s227 = smul.addr %s226, 1024
        %s228 = scalar_lea.vmem [#allocation2], %s227
        %p229 = pneg %p43
        %p230 = pneg %p40
        %p231 = pneg %p64
        %p232 = pneg %p61
        %p233 = pneg %p85
        %p234 = pneg %p82
        %p235 = pneg %p106
        %p236 = pneg %p103
        %p237 = pneg %p127
        %p238 = pneg %p124
        %p239 = pneg %p153
        %p240 = pneg %p150
        %s241 = sand.u32 %s140, 1
        %s242 = scalar_lea.sflag [#allocation4], %s241
        %s243 = sand.u32 %s140, 1
        %s244 = smul.addr %s243, 512
        %s245 = scalar_lea.vmem [#allocation5], %s244
        %s246 = smul.u32 64, %s22
        %s247 = smul.u32 64, %s22
        %v248 = vld [vmem:[%s218] sm:$0xff]
        %v249 = vld [vmem:[%s218 + $0x8] sm:$0xff]
        %v250 = vld [vmem:[%s218 + $0x10] sm:$0xff]
        %v251 = vld [vmem:[%s218 + $0x18] sm:$0xff]
        %v252 = vld [vmem:[%s218 + $0x20] sm:$0xff]
        %v253 = vld [vmem:[%s218 + $0x28] sm:$0xff]
        %v254 = vld [vmem:[%s218 + $0x30] sm:$0xff]
        %v255 = vld [vmem:[%s218 + $0x38] sm:$0xff]
        %v256 = vld [vmem:[%s218 + $0x40] sm:$0xff]
        %v257 = vld [vmem:[%s218 + $0x48] sm:$0xff]
        %v258 = vld [vmem:[%s218 + $0x50] sm:$0xff]
        %v259 = vld [vmem:[%s218 + $0x58] sm:$0xff]
        %v260 = vld [vmem:[%s218 + $0x60] sm:$0xff]
        %v261 = vld [vmem:[%s218 + $0x68] sm:$0xff]
        %v262 = vld [vmem:[%s218 + $0x70] sm:$0xff]
        %v263 = vld [vmem:[%s218 + $0x78] sm:$0xff]
        %v264 = vld [vmem:[%s218 + $0x80] sm:$0xff]
        %v265 = vld [vmem:[%s218 + $0x88] sm:$0xff]
        %v266 = vld [vmem:[%s218 + $0x90] sm:$0xff]
        %v267 = vld [vmem:[%s218 + $0x98] sm:$0xff]
        %v268 = vld [vmem:[%s218 + $0xa0] sm:$0xff]
        %v269 = vld [vmem:[%s218 + $0xa8] sm:$0xff]
        %v270 = vld [vmem:[%s218 + $0xb0] sm:$0xff]
        %v271 = vld [vmem:[%s218 + $0xb8] sm:$0xff]
        %v272 = vld [vmem:[%s218 + $0xc0] sm:$0xff]
        %v273 = vld [vmem:[%s218 + $0xc8] sm:$0xff]
        %v274 = vld [vmem:[%s218 + $0xd0] sm:$0xff]
        %v275 = vld [vmem:[%s218 + $0xd8] sm:$0xff]
        %v276 = vld [vmem:[%s218 + $0xe0] sm:$0xff]
        %v277 = vld [vmem:[%s218 + $0xe8] sm:$0xff]
        %v278 = vld [vmem:[%s218 + $0xf0] sm:$0xff]
        %v279 = vld [vmem:[%s218 + $0xf8] sm:$0xff]
        %v280 = vld [vmem:[%s218 + $0x100] sm:$0xff]
        %v281 = vld [vmem:[%s218 + $0x108] sm:$0xff]
        %v282 = vld [vmem:[%s218 + $0x110] sm:$0xff]
        %v283 = vld [vmem:[%s218 + $0x118] sm:$0xff]
        %v284 = vld [vmem:[%s218 + $0x120] sm:$0xff]
        %v285 = vld [vmem:[%s218 + $0x128] sm:$0xff]
        %v286 = vld [vmem:[%s218 + $0x130] sm:$0xff]
        %v287 = vld [vmem:[%s218 + $0x138] sm:$0xff]
        %v288 = vld [vmem:[%s218 + $0x140] sm:$0xff]
        %v289 = vld [vmem:[%s218 + $0x148] sm:$0xff]
        %v290 = vld [vmem:[%s218 + $0x150] sm:$0xff]
        %v291 = vld [vmem:[%s218 + $0x158] sm:$0xff]
        %v292 = vld [vmem:[%s218 + $0x160] sm:$0xff]
        %v293 = vld [vmem:[%s218 + $0x168] sm:$0xff]
        %v294 = vld [vmem:[%s218 + $0x170] sm:$0xff]
        %v295 = vld [vmem:[%s218 + $0x178] sm:$0xff]
        %v296 = vld [vmem:[%s218 + $0x180] sm:$0xff]
        %v297 = vld [vmem:[%s218 + $0x188] sm:$0xff]
        %v298 = vld [vmem:[%s218 + $0x190] sm:$0xff]
        %v299 = vld [vmem:[%s218 + $0x198] sm:$0xff]
        %v300 = vld [vmem:[%s218 + $0x1a0] sm:$0xff]
        %v301 = vld [vmem:[%s218 + $0x1a8] sm:$0xff]
        %v302 = vld [vmem:[%s218 + $0x1b0] sm:$0xff]
        %v303 = vld [vmem:[%s218 + $0x1b8] sm:$0xff]
        %v304 = vld [vmem:[%s218 + $0x1c0] sm:$0xff]
        %v305 = vld [vmem:[%s218 + $0x1c8] sm:$0xff]
        %v306 = vld [vmem:[%s218 + $0x1d0] sm:$0xff]
        %v307 = vld [vmem:[%s218 + $0x1d8] sm:$0xff]
        %v308 = vld [vmem:[%s218 + $0x1e0] sm:$0xff]
        %v309 = vld [vmem:[%s218 + $0x1e8] sm:$0xff]
        %v310 = vld [vmem:[%s218 + $0x1f0] sm:$0xff]
        %v311 = vld [vmem:[%s218 + $0x1f8] sm:$0xff]
        %v312 = vld [vmem:[%s218 + $0x200] sm:$0xff]
        %v313 = vld [vmem:[%s218 + $0x208] sm:$0xff]
        %v314 = vld [vmem:[%s218 + $0x210] sm:$0xff]
        %v315 = vld [vmem:[%s218 + $0x218] sm:$0xff]
        %v316 = vld [vmem:[%s218 + $0x220] sm:$0xff]
        %v317 = vld [vmem:[%s218 + $0x228] sm:$0xff]
        %v318 = vld [vmem:[%s218 + $0x230] sm:$0xff]
        %v319 = vld [vmem:[%s218 + $0x238] sm:$0xff]
        %v320 = vld [vmem:[%s218 + $0x240] sm:$0xff]
        %v321 = vld [vmem:[%s218 + $0x248] sm:$0xff]
        %v322 = vld [vmem:[%s218 + $0x250] sm:$0xff]
        %v323 = vld [vmem:[%s218 + $0x258] sm:$0xff]
        %v324 = vld [vmem:[%s218 + $0x260] sm:$0xff]
        %v325 = vld [vmem:[%s218 + $0x268] sm:$0xff]
        %v326 = vld [vmem:[%s218 + $0x270] sm:$0xff]
        %v327 = vld [vmem:[%s218 + $0x278] sm:$0xff]
        %v328 = vld [vmem:[%s218 + $0x280] sm:$0xff]
        %v329 = vld [vmem:[%s218 + $0x288] sm:$0xff]
        %v330 = vld [vmem:[%s218 + $0x290] sm:$0xff]
        %v331 = vld [vmem:[%s218 + $0x298] sm:$0xff]
        %v332 = vld [vmem:[%s218 + $0x2a0] sm:$0xff]
        %v333 = vld [vmem:[%s218 + $0x2a8] sm:$0xff]
        %v334 = vld [vmem:[%s218 + $0x2b0] sm:$0xff]
        %v335 = vld [vmem:[%s218 + $0x2b8] sm:$0xff]
        %v336 = vld [vmem:[%s218 + $0x2c0] sm:$0xff]
        %v337 = vld [vmem:[%s218 + $0x2c8] sm:$0xff]
        %v338 = vld [vmem:[%s218 + $0x2d0] sm:$0xff]
        %v339 = vld [vmem:[%s218 + $0x2d8] sm:$0xff]
        %v340 = vld [vmem:[%s218 + $0x2e0] sm:$0xff]
        %v341 = vld [vmem:[%s218 + $0x2e8] sm:$0xff]
        %v342 = vld [vmem:[%s218 + $0x2f0] sm:$0xff]
        %v343 = vld [vmem:[%s218 + $0x2f8] sm:$0xff]
        %v344 = vld [vmem:[%s218 + $0x300] sm:$0xff]
        %v345 = vld [vmem:[%s218 + $0x308] sm:$0xff]
        %v346 = vld [vmem:[%s218 + $0x310] sm:$0xff]
        %v347 = vld [vmem:[%s218 + $0x318] sm:$0xff]
        %v348 = vld [vmem:[%s218 + $0x320] sm:$0xff]
        %v349 = vld [vmem:[%s218 + $0x328] sm:$0xff]
        %v350 = vld [vmem:[%s218 + $0x330] sm:$0xff]
        %v351 = vld [vmem:[%s218 + $0x338] sm:$0xff]
        %v352 = vld [vmem:[%s218 + $0x340] sm:$0xff]
        %v353 = vld [vmem:[%s218 + $0x348] sm:$0xff]
        %v354 = vld [vmem:[%s218 + $0x350] sm:$0xff]
        %v355 = vld [vmem:[%s218 + $0x358] sm:$0xff]
        %v356 = vld [vmem:[%s218 + $0x360] sm:$0xff]
        %v357 = vld [vmem:[%s218 + $0x368] sm:$0xff]
        %v358 = vld [vmem:[%s218 + $0x370] sm:$0xff]
        %v359 = vld [vmem:[%s218 + $0x378] sm:$0xff]
        %v360 = vld [vmem:[%s218 + $0x380] sm:$0xff]
        %v361 = vld [vmem:[%s218 + $0x388] sm:$0xff]
        %v362 = vld [vmem:[%s218 + $0x390] sm:$0xff]
        %v363 = vld [vmem:[%s218 + $0x398] sm:$0xff]
        %v364 = vld [vmem:[%s218 + $0x3a0] sm:$0xff]
        %v365 = vld [vmem:[%s218 + $0x3a8] sm:$0xff]
        %v366 = vld [vmem:[%s218 + $0x3b0] sm:$0xff]
        %v367 = vld [vmem:[%s218 + $0x3b8] sm:$0xff]
        %v368 = vld [vmem:[%s218 + $0x3c0] sm:$0xff]
        %v369 = vld [vmem:[%s218 + $0x3c8] sm:$0xff]
        %v370 = vld [vmem:[%s218 + $0x3d0] sm:$0xff]
        %v371 = vld [vmem:[%s218 + $0x3d8] sm:$0xff]
        %v372 = vld [vmem:[%s218 + $0x3e0] sm:$0xff]
        %v373 = vld [vmem:[%s218 + $0x3e8] sm:$0xff]
        %v374 = vld [vmem:[%s218 + $0x3f0] sm:$0xff]
        %v375 = vld [vmem:[%s218 + $0x3f8] sm:$0xff]
        %v376 = vpack.c.bf16 %v250, %v248
        %v377 = vpack.c.bf16 %v251, %v249
        %v378 = vpack.c.bf16 %v254, %v252
        %v379 = vpack.c.bf16 %v255, %v253
        %v380 = vpack.c.bf16 %v258, %v256
        %v381 = vpack.c.bf16 %v259, %v257
        %v382 = vpack.c.bf16 %v262, %v260
        %v383 = vpack.c.bf16 %v263, %v261
        %v384 = vpack.c.bf16 %v266, %v264
        %v385 = vpack.c.bf16 %v267, %v265
        %v386 = vpack.c.bf16 %v270, %v268
        %v387 = vpack.c.bf16 %v271, %v269
        %v388 = vpack.c.bf16 %v274, %v272
        %v389 = vpack.c.bf16 %v275, %v273
        %v390 = vpack.c.bf16 %v278, %v276
        %v391 = vpack.c.bf16 %v279, %v277
        %v392 = vpack.c.bf16 %v282, %v280
        %v393 = vpack.c.bf16 %v283, %v281
        %v394 = vpack.c.bf16 %v286, %v284
        %v395 = vpack.c.bf16 %v287, %v285
        %v396 = vpack.c.bf16 %v290, %v288
        %v397 = vpack.c.bf16 %v291, %v289
        %v398 = vpack.c.bf16 %v294, %v292
        %v399 = vpack.c.bf16 %v295, %v293
        %v400 = vpack.c.bf16 %v298, %v296
        %v401 = vpack.c.bf16 %v299, %v297
        %v402 = vpack.c.bf16 %v302, %v300
        %v403 = vpack.c.bf16 %v303, %v301
        %v404 = vpack.c.bf16 %v306, %v304
        %v405 = vpack.c.bf16 %v307, %v305
        %v406 = vpack.c.bf16 %v310, %v308
        %v407 = vpack.c.bf16 %v311, %v309
        %v408 = vpack.c.bf16 %v314, %v312
        %v409 = vpack.c.bf16 %v315, %v313
        %v410 = vpack.c.bf16 %v318, %v316
        %v411 = vpack.c.bf16 %v319, %v317
        %v412 = vpack.c.bf16 %v322, %v320
        %v413 = vpack.c.bf16 %v323, %v321
        %v414 = vpack.c.bf16 %v326, %v324
        %v415 = vpack.c.bf16 %v327, %v325
        %v416 = vpack.c.bf16 %v330, %v328
        %v417 = vpack.c.bf16 %v331, %v329
        %v418 = vpack.c.bf16 %v334, %v332
        %v419 = vpack.c.bf16 %v335, %v333
        %v420 = vpack.c.bf16 %v338, %v336
        %v421 = vpack.c.bf16 %v339, %v337
        %v422 = vpack.c.bf16 %v342, %v340
        %v423 = vpack.c.bf16 %v343, %v341
        %v424 = vpack.c.bf16 %v346, %v344
        %v425 = vpack.c.bf16 %v347, %v345
        %v426 = vpack.c.bf16 %v350, %v348
        %v427 = vpack.c.bf16 %v351, %v349
        %v428 = vpack.c.bf16 %v354, %v352
        %v429 = vpack.c.bf16 %v355, %v353
        %v430 = vpack.c.bf16 %v358, %v356
        %v431 = vpack.c.bf16 %v359, %v357
        %v432 = vpack.c.bf16 %v362, %v360
        %v433 = vpack.c.bf16 %v363, %v361
        %v434 = vpack.c.bf16 %v366, %v364
        %v435 = vpack.c.bf16 %v367, %v365
        %v436 = vpack.c.bf16 %v370, %v368
        %v437 = vpack.c.bf16 %v371, %v369
        %v438 = vpack.c.bf16 %v374, %v372
        %v439 = vpack.c.bf16 %v375, %v373
        %v440 = vld [vmem:[%s1] sm:$0xf]
        %v441 = vld [vmem:[%s1 + $0x4] sm:$0xf]
        %v442 = vld [vmem:[%s1 + $0x8] sm:$0xf]
        %v443 = vld [vmem:[%s1 + $0xc] sm:$0xf]
        %v444 = vld [vmem:[%s1 + $0x10] sm:$0xf]
        %v445 = vld [vmem:[%s1 + $0x14] sm:$0xf]
        %v446 = vld [vmem:[%s1 + $0x18] sm:$0xf]
        %v447 = vld [vmem:[%s1 + $0x1c] sm:$0xf]
        %v448 = vld [vmem:[%s1 + $0x20] sm:$0xf]
        %v449 = vld [vmem:[%s1 + $0x24] sm:$0xf]
        %v450 = vld [vmem:[%s1 + $0x28] sm:$0xf]
        %v451 = vld [vmem:[%s1 + $0x2c] sm:$0xf]
        %v452 = vld [vmem:[%s1 + $0x30] sm:$0xf]
        %v453 = vld [vmem:[%s1 + $0x34] sm:$0xf]
        %v454 = vld [vmem:[%s1 + $0x38] sm:$0xf]
        %v455 = vld [vmem:[%s1 + $0x3c] sm:$0xf]
        %v456 = vld [vmem:[%s1 + $0x40] sm:$0xf]
        %v457 = vld [vmem:[%s1 + $0x44] sm:$0xf]
        %v458 = vld [vmem:[%s1 + $0x48] sm:$0xf]
        %v459 = vld [vmem:[%s1 + $0x4c] sm:$0xf]
        %v460 = vld [vmem:[%s1 + $0x50] sm:$0xf]
        %v461 = vld [vmem:[%s1 + $0x54] sm:$0xf]
        %v462 = vld [vmem:[%s1 + $0x58] sm:$0xf]
        %v463 = vld [vmem:[%s1 + $0x5c] sm:$0xf]
        %v464 = vld [vmem:[%s1 + $0x60] sm:$0xf]
        %v465 = vld [vmem:[%s1 + $0x64] sm:$0xf]
        %v466 = vld [vmem:[%s1 + $0x68] sm:$0xf]
        %v467 = vld [vmem:[%s1 + $0x6c] sm:$0xf]
        %v468 = vld [vmem:[%s1 + $0x70] sm:$0xf]
        %v469 = vld [vmem:[%s1 + $0x74] sm:$0xf]
        %v470 = vld [vmem:[%s1 + $0x78] sm:$0xf]
        %v471 = vld [vmem:[%s1 + $0x7c] sm:$0xf]
        %v472 = vld [vmem:[%s2] sm:$0x1]
        %v474 = vperm.slane %v472, 0
        %v508 = vunpack.c.l.b16 %v440
        %v509 = vunpack.c.l.b16 %v441
        %v510 = vunpack.c.l.b16 %v442
        %v511 = vunpack.c.l.b16 %v443
        %v512 = vunpack.c.l.b16 %v444
        %v513 = vunpack.c.l.b16 %v445
        %v514 = vunpack.c.l.b16 %v446
        %v515 = vunpack.c.l.b16 %v447
        %v516 = vunpack.c.l.b16 %v448
        %v517 = vunpack.c.l.b16 %v449
        %v518 = vunpack.c.l.b16 %v450
        %v519 = vunpack.c.l.b16 %v451
        %v520 = vunpack.c.l.b16 %v452
        %v521 = vunpack.c.l.b16 %v453
        %v522 = vunpack.c.l.b16 %v454
        %v523 = vunpack.c.l.b16 %v455
        %v524 = vunpack.c.l.b16 %v456
        %v525 = vunpack.c.l.b16 %v457
        %v526 = vunpack.c.l.b16 %v458
        %v527 = vunpack.c.l.b16 %v459
        %v528 = vunpack.c.l.b16 %v460
        %v529 = vunpack.c.l.b16 %v461
        %v530 = vunpack.c.l.b16 %v462
        %v531 = vunpack.c.l.b16 %v463
        %v532 = vunpack.c.l.b16 %v464
        %v533 = vunpack.c.l.b16 %v465
        %v534 = vunpack.c.l.b16 %v466
        %v535 = vunpack.c.l.b16 %v467
        %v536 = vunpack.c.l.b16 %v468
        %v537 = vunpack.c.l.b16 %v469
        %v538 = vunpack.c.l.b16 %v470
        %v539 = vunpack.c.l.b16 %v471
        %v540 = vpack.c.b16 %v509, %v508
        %v541 = vpack.c.b16 %v511, %v510
        %v542 = vpack.c.b16 %v513, %v512
        %v543 = vpack.c.b16 %v515, %v514
        %v544 = vpack.c.b16 %v517, %v516
        %v545 = vpack.c.b16 %v519, %v518
        %v546 = vpack.c.b16 %v521, %v520
        %v547 = vpack.c.b16 %v523, %v522
        %v548 = vpack.c.b16 %v525, %v524
        %v549 = vpack.c.b16 %v527, %v526
        %v550 = vpack.c.b16 %v529, %v528
        %v551 = vpack.c.b16 %v531, %v530
        %v552 = vpack.c.b16 %v533, %v532
        %v553 = vpack.c.b16 %v535, %v534
        %v554 = vpack.c.b16 %v537, %v536
        %v555 = vpack.c.b16 %v539, %v538
        %572 = vmatpush.bf16.msra.mxu0 %v547
        %573 = vmatpush.bf16.msra.mxu0 %v546
        %574 = vmatpush.bf16.msra.mxu0 %v545
        %575 = vmatpush.bf16.msra.mxu0 %v544
        %576 = vmatpush.bf16.msra.mxu0 %v543
        %577 = vmatpush.bf16.msra.mxu0 %v542
        %578 = vmatpush.bf16.msra.mxu0 %v541
        %579 = vmatpush.bf16.msra.mxu0 %v540
        %580 = vmatmul.bf16.gmra.mxu0 %v376
        %v581 = vpop.f32.mrf.mxu0
        %v582 = vadd.f32 %v474, %v581
        %v583 = vpop.f32.mrf.mxu0
        %v584 = vadd.f32 %v474, %v583
        %585 = vmatmul.bf16.gmra.mxu0 %v378
        %v586 = vpop.f32.mrf.mxu0
        %v587 = vadd.f32 %v474, %v586
        %v588 = vpop.f32.mrf.mxu0
        %v589 = vadd.f32 %v474, %v588
        %590 = vmatmul.bf16.gmra.mxu0 %v380
        %v591 = vpop.f32.mrf.mxu0
        %v592 = vadd.f32 %v474, %v591
        %v593 = vpop.f32.mrf.mxu0
        %v594 = vadd.f32 %v474, %v593
        %595 = vmatmul.bf16.gmra.mxu0 %v382
        %v596 = vpop.f32.mrf.mxu0
        %v597 = vadd.f32 %v474, %v596
        %v598 = vpop.f32.mrf.mxu0
        %v599 = vadd.f32 %v474, %v598
        %600 = vmatmul.bf16.gmra.mxu0 %v384
        %v601 = vpop.f32.mrf.mxu0
        %v602 = vadd.f32 %v474, %v601
        %v603 = vpop.f32.mrf.mxu0
        %v604 = vadd.f32 %v474, %v603
        %605 = vmatmul.bf16.gmra.mxu0 %v386
        %v606 = vpop.f32.mrf.mxu0
        %v607 = vadd.f32 %v474, %v606
        %v608 = vpop.f32.mrf.mxu0
        %v609 = vadd.f32 %v474, %v608
        %610 = vmatmul.bf16.gmra.mxu0 %v388
        %v611 = vpop.f32.mrf.mxu0
        %v612 = vadd.f32 %v474, %v611
        %v613 = vpop.f32.mrf.mxu0
        %v614 = vadd.f32 %v474, %v613
        %615 = vmatmul.bf16.gmra.mxu0 %v390
        %v616 = vpop.f32.mrf.mxu0
        %v617 = vadd.f32 %v474, %v616
        %v618 = vpop.f32.mrf.mxu0
        %v619 = vadd.f32 %v474, %v618
        %620 = vmatmul.bf16.gmra.mxu0 %v392
        %v621 = vpop.f32.mrf.mxu0
        %v622 = vadd.f32 %v474, %v621
        %v623 = vpop.f32.mrf.mxu0
        %v624 = vadd.f32 %v474, %v623
        %625 = vmatmul.bf16.gmra.mxu0 %v394
        %v626 = vpop.f32.mrf.mxu0
        %v627 = vadd.f32 %v474, %v626
        %v628 = vpop.f32.mrf.mxu0
        %v629 = vadd.f32 %v474, %v628
        %630 = vmatmul.bf16.gmra.mxu0 %v396
        %v631 = vpop.f32.mrf.mxu0
        %v632 = vadd.f32 %v474, %v631
        %v633 = vpop.f32.mrf.mxu0
        %v634 = vadd.f32 %v474, %v633
        %635 = vmatmul.bf16.gmra.mxu0 %v398
        %v636 = vpop.f32.mrf.mxu0
        %v637 = vadd.f32 %v474, %v636
        %v638 = vpop.f32.mrf.mxu0
        %v639 = vadd.f32 %v474, %v638
        %640 = vmatmul.bf16.gmra.mxu0 %v400
        %v641 = vpop.f32.mrf.mxu0
        %v642 = vadd.f32 %v474, %v641
        %v643 = vpop.f32.mrf.mxu0
        %v644 = vadd.f32 %v474, %v643
        %645 = vmatmul.bf16.gmra.mxu0 %v402
        %v646 = vpop.f32.mrf.mxu0
        %v647 = vadd.f32 %v474, %v646
        %v648 = vpop.f32.mrf.mxu0
        %v649 = vadd.f32 %v474, %v648
        %650 = vmatmul.bf16.gmra.mxu0 %v404
        %v651 = vpop.f32.mrf.mxu0
        %v652 = vadd.f32 %v474, %v651
        %v653 = vpop.f32.mrf.mxu0
        %v654 = vadd.f32 %v474, %v653
        %655 = vmatmul.bf16.gmra.mxu0 %v406
        %v656 = vpop.f32.mrf.mxu0
        %v657 = vadd.f32 %v474, %v656
        %v658 = vpop.f32.mrf.mxu0
        %v659 = vadd.f32 %v474, %v658
        %660 = vmatmul.bf16.gmra.mxu0 %v408
        %v661 = vpop.f32.mrf.mxu0
        %v662 = vadd.f32 %v474, %v661
        %v663 = vpop.f32.mrf.mxu0
        %v664 = vadd.f32 %v474, %v663
        %665 = vmatmul.bf16.gmra.mxu0 %v410
        %v666 = vpop.f32.mrf.mxu0
        %v667 = vadd.f32 %v474, %v666
        %v668 = vpop.f32.mrf.mxu0
        %v669 = vadd.f32 %v474, %v668
        %670 = vmatmul.bf16.gmra.mxu0 %v412
        %v671 = vpop.f32.mrf.mxu0
        %v672 = vadd.f32 %v474, %v671
        %v673 = vpop.f32.mrf.mxu0
        %v674 = vadd.f32 %v474, %v673
        %675 = vmatmul.bf16.gmra.mxu0 %v414
        %v676 = vpop.f32.mrf.mxu0
        %v677 = vadd.f32 %v474, %v676
        %v678 = vpop.f32.mrf.mxu0
        %v679 = vadd.f32 %v474, %v678
        %680 = vmatmul.bf16.gmra.mxu0 %v416
        %v681 = vpop.f32.mrf.mxu0
        %v682 = vadd.f32 %v474, %v681
        %v683 = vpop.f32.mrf.mxu0
        %v684 = vadd.f32 %v474, %v683
        %685 = vmatmul.bf16.gmra.mxu0 %v418
        %v686 = vpop.f32.mrf.mxu0
        %v687 = vadd.f32 %v474, %v686
        %v688 = vpop.f32.mrf.mxu0
        %v689 = vadd.f32 %v474, %v688
        %690 = vmatmul.bf16.gmra.mxu0 %v420
        %v691 = vpop.f32.mrf.mxu0
        %v692 = vadd.f32 %v474, %v691
        %v693 = vpop.f32.mrf.mxu0
        %v694 = vadd.f32 %v474, %v693
        %695 = vmatmul.bf16.gmra.mxu0 %v422
        %v696 = vpop.f32.mrf.mxu0
        %v697 = vadd.f32 %v474, %v696
        %v698 = vpop.f32.mrf.mxu0
        %v699 = vadd.f32 %v474, %v698
        %700 = vmatmul.bf16.gmra.mxu0 %v424
        %v701 = vpop.f32.mrf.mxu0
        %v702 = vadd.f32 %v474, %v701
        %v703 = vpop.f32.mrf.mxu0
        %v704 = vadd.f32 %v474, %v703
        %705 = vmatmul.bf16.gmra.mxu0 %v426
        %v706 = vpop.f32.mrf.mxu0
        %v707 = vadd.f32 %v474, %v706
        %v708 = vpop.f32.mrf.mxu0
        %v709 = vadd.f32 %v474, %v708
        %710 = vmatmul.bf16.gmra.mxu0 %v428
        %v711 = vpop.f32.mrf.mxu0
        %v712 = vadd.f32 %v474, %v711
        %v713 = vpop.f32.mrf.mxu0
        %v714 = vadd.f32 %v474, %v713
        %715 = vmatmul.bf16.gmra.mxu0 %v430
        %v716 = vpop.f32.mrf.mxu0
        %v717 = vadd.f32 %v474, %v716
        %v718 = vpop.f32.mrf.mxu0
        %v719 = vadd.f32 %v474, %v718
        %720 = vmatmul.bf16.gmra.mxu0 %v432
        %v721 = vpop.f32.mrf.mxu0
        %v722 = vadd.f32 %v474, %v721
        %v723 = vpop.f32.mrf.mxu0
        %v724 = vadd.f32 %v474, %v723
        %725 = vmatmul.bf16.gmra.mxu0 %v434
        %v726 = vpop.f32.mrf.mxu0
        %v727 = vadd.f32 %v474, %v726
        %v728 = vpop.f32.mrf.mxu0
        %v729 = vadd.f32 %v474, %v728
        %730 = vmatmul.bf16.gmra.mxu0 %v436
        %v731 = vpop.f32.mrf.mxu0
        %v732 = vadd.f32 %v474, %v731
        %v733 = vpop.f32.mrf.mxu0
        %v734 = vadd.f32 %v474, %v733
        %735 = vmatmul.bf16.gmra.mxu0 %v438
        %v736 = vpop.f32.mrf.mxu0
        %v737 = vadd.f32 %v474, %v736
        %v738 = vpop.f32.mrf.mxu0
        %v739 = vadd.f32 %v474, %v738
        %740 = vdwg.mxu0
        %741 = vmatpush.bf16.msra.mxu0 %v555
        %742 = vmatpush.bf16.msra.mxu0 %v554
        %743 = vmatpush.bf16.msra.mxu0 %v553
        %744 = vmatpush.bf16.msra.mxu0 %v552
        %745 = vmatpush.bf16.msra.mxu0 %v551
        %746 = vmatpush.bf16.msra.mxu0 %v550
        %747 = vmatpush.bf16.msra.mxu0 %v549
        %748 = vmatpush.bf16.msra.mxu0 %v548
        %749 = vmatmul.bf16.gmra.mxu0 %v377
        %v750 = vpop.f32.mrf.mxu0
        %v751 = vadd.f32 %v582, %v750
        %v752 = vpop.f32.mrf.mxu0
        %v753 = vadd.f32 %v584, %v752
        %754 = vmatmul.bf16.gmra.mxu0 %v379
        %v755 = vpop.f32.mrf.mxu0
        %v756 = vadd.f32 %v587, %v755
        %v757 = vpop.f32.mrf.mxu0
        %v758 = vadd.f32 %v589, %v757
        %759 = vmatmul.bf16.gmra.mxu0 %v381
        %v760 = vpop.f32.mrf.mxu0
        %v761 = vadd.f32 %v592, %v760
        %v762 = vpop.f32.mrf.mxu0
        %v763 = vadd.f32 %v594, %v762
        %764 = vmatmul.bf16.gmra.mxu0 %v383
        %v765 = vpop.f32.mrf.mxu0
        %v766 = vadd.f32 %v597, %v765
        %v767 = vpop.f32.mrf.mxu0
        %v768 = vadd.f32 %v599, %v767
        %769 = vmatmul.bf16.gmra.mxu0 %v385
        %v770 = vpop.f32.mrf.mxu0
        %v771 = vadd.f32 %v602, %v770
        %v772 = vpop.f32.mrf.mxu0
        %v773 = vadd.f32 %v604, %v772
        %774 = vmatmul.bf16.gmra.mxu0 %v387
        %v775 = vpop.f32.mrf.mxu0
        %v776 = vadd.f32 %v607, %v775
        %v777 = vpop.f32.mrf.mxu0
        %v778 = vadd.f32 %v609, %v777
        %779 = vmatmul.bf16.gmra.mxu0 %v389
        %v780 = vpop.f32.mrf.mxu0
        %v781 = vadd.f32 %v612, %v780
        %v782 = vpop.f32.mrf.mxu0
        %v783 = vadd.f32 %v614, %v782
        %784 = vmatmul.bf16.gmra.mxu0 %v391
        %v785 = vpop.f32.mrf.mxu0
        %v786 = vadd.f32 %v617, %v785
        %v787 = vpop.f32.mrf.mxu0
        %v788 = vadd.f32 %v619, %v787
        %789 = vmatmul.bf16.gmra.mxu0 %v393
        %v790 = vpop.f32.mrf.mxu0
        %v791 = vadd.f32 %v622, %v790
        %v792 = vpop.f32.mrf.mxu0
        %v793 = vadd.f32 %v624, %v792
        %794 = vmatmul.bf16.gmra.mxu0 %v395
        %v795 = vpop.f32.mrf.mxu0
        %v796 = vadd.f32 %v627, %v795
        %v797 = vpop.f32.mrf.mxu0
        %v798 = vadd.f32 %v629, %v797
        %799 = vmatmul.bf16.gmra.mxu0 %v397
        %v800 = vpop.f32.mrf.mxu0
        %v801 = vadd.f32 %v632, %v800
        %v802 = vpop.f32.mrf.mxu0
        %v803 = vadd.f32 %v634, %v802
        %804 = vmatmul.bf16.gmra.mxu0 %v399
        %v805 = vpop.f32.mrf.mxu0
        %v806 = vadd.f32 %v637, %v805
        %v807 = vpop.f32.mrf.mxu0
        %v808 = vadd.f32 %v639, %v807
        %809 = vmatmul.bf16.gmra.mxu0 %v401
        %v810 = vpop.f32.mrf.mxu0
        %v811 = vadd.f32 %v642, %v810
        %v812 = vpop.f32.mrf.mxu0
        %v813 = vadd.f32 %v644, %v812
        %814 = vmatmul.bf16.gmra.mxu0 %v403
        %v815 = vpop.f32.mrf.mxu0
        %v816 = vadd.f32 %v647, %v815
        %v817 = vpop.f32.mrf.mxu0
        %v818 = vadd.f32 %v649, %v817
        %819 = vmatmul.bf16.gmra.mxu0 %v405
        %v820 = vpop.f32.mrf.mxu0
        %v821 = vadd.f32 %v652, %v820
        %v822 = vpop.f32.mrf.mxu0
        %v823 = vadd.f32 %v654, %v822
        %824 = vmatmul.bf16.gmra.mxu0 %v407
        %v825 = vpop.f32.mrf.mxu0
        %v826 = vadd.f32 %v657, %v825
        %v827 = vpop.f32.mrf.mxu0
        %v828 = vadd.f32 %v659, %v827
        %829 = vmatmul.bf16.gmra.mxu0 %v409
        %v830 = vpop.f32.mrf.mxu0
        %v831 = vadd.f32 %v662, %v830
        %v832 = vpop.f32.mrf.mxu0
        %v833 = vadd.f32 %v664, %v832
        %834 = vmatmul.bf16.gmra.mxu0 %v411
        %v835 = vpop.f32.mrf.mxu0
        %v836 = vadd.f32 %v667, %v835
        %v837 = vpop.f32.mrf.mxu0
        %v838 = vadd.f32 %v669, %v837
        %839 = vmatmul.bf16.gmra.mxu0 %v413
        %v840 = vpop.f32.mrf.mxu0
        %v841 = vadd.f32 %v672, %v840
        %v842 = vpop.f32.mrf.mxu0
        %v843 = vadd.f32 %v674, %v842
        %844 = vmatmul.bf16.gmra.mxu0 %v415
        %v845 = vpop.f32.mrf.mxu0
        %v846 = vadd.f32 %v677, %v845
        %v847 = vpop.f32.mrf.mxu0
        %v848 = vadd.f32 %v679, %v847
        %849 = vmatmul.bf16.gmra.mxu0 %v417
        %v850 = vpop.f32.mrf.mxu0
        %v851 = vadd.f32 %v682, %v850
        %v852 = vpop.f32.mrf.mxu0
        %v853 = vadd.f32 %v684, %v852
        %854 = vmatmul.bf16.gmra.mxu0 %v419
        %v855 = vpop.f32.mrf.mxu0
        %v856 = vadd.f32 %v687, %v855
        %v857 = vpop.f32.mrf.mxu0
        %v858 = vadd.f32 %v689, %v857
        %859 = vmatmul.bf16.gmra.mxu0 %v421
        %v860 = vpop.f32.mrf.mxu0
        %v861 = vadd.f32 %v692, %v860
        %v862 = vpop.f32.mrf.mxu0
        %v863 = vadd.f32 %v694, %v862
        %864 = vmatmul.bf16.gmra.mxu0 %v423
        %v865 = vpop.f32.mrf.mxu0
        %v866 = vadd.f32 %v697, %v865
        %v867 = vpop.f32.mrf.mxu0
        %v868 = vadd.f32 %v699, %v867
        %869 = vmatmul.bf16.gmra.mxu0 %v425
        %v870 = vpop.f32.mrf.mxu0
        %v871 = vadd.f32 %v702, %v870
        %v872 = vpop.f32.mrf.mxu0
        %v873 = vadd.f32 %v704, %v872
        %874 = vmatmul.bf16.gmra.mxu0 %v427
        %v875 = vpop.f32.mrf.mxu0
        %v876 = vadd.f32 %v707, %v875
        %v877 = vpop.f32.mrf.mxu0
        %v878 = vadd.f32 %v709, %v877
        %879 = vmatmul.bf16.gmra.mxu0 %v429
        %v880 = vpop.f32.mrf.mxu0
        %v881 = vadd.f32 %v712, %v880
        %v882 = vpop.f32.mrf.mxu0
        %v883 = vadd.f32 %v714, %v882
        %884 = vmatmul.bf16.gmra.mxu0 %v431
        %v885 = vpop.f32.mrf.mxu0
        %v886 = vadd.f32 %v717, %v885
        %v887 = vpop.f32.mrf.mxu0
        %v888 = vadd.f32 %v719, %v887
        %889 = vmatmul.bf16.gmra.mxu0 %v433
        %v890 = vpop.f32.mrf.mxu0
        %v891 = vadd.f32 %v722, %v890
        %v892 = vpop.f32.mrf.mxu0
        %v893 = vadd.f32 %v724, %v892
        %894 = vmatmul.bf16.gmra.mxu0 %v435
        %v895 = vpop.f32.mrf.mxu0
        %v896 = vadd.f32 %v727, %v895
        %v897 = vpop.f32.mrf.mxu0
        %v898 = vadd.f32 %v729, %v897
        %899 = vmatmul.bf16.gmra.mxu0 %v437
        %v900 = vpop.f32.mrf.mxu0
        %v901 = vadd.f32 %v732, %v900
        %v902 = vpop.f32.mrf.mxu0
        %v903 = vadd.f32 %v734, %v902
        %904 = vmatmul.bf16.gmra.mxu0 %v439
        %v905 = vpop.f32.mrf.mxu0
        %v906 = vadd.f32 %v737, %v905
        %v907 = vpop.f32.mrf.mxu0
        %v908 = vadd.f32 %v739, %v907
        %909 = vdwg.mxu0
        %v910 = vmax.f32 %v751, 0.0
        %v911 = vmax.f32 %v753, 0.0
        %v912 = vmax.f32 %v756, 0.0
        %v913 = vmax.f32 %v758, 0.0
        %v914 = vmax.f32 %v761, 0.0
        %v915 = vmax.f32 %v763, 0.0
        %v916 = vmax.f32 %v766, 0.0
        %v917 = vmax.f32 %v768, 0.0
        %v918 = vmax.f32 %v771, 0.0
        %v919 = vmax.f32 %v773, 0.0
        %v920 = vmax.f32 %v776, 0.0
        %v921 = vmax.f32 %v778, 0.0
        %v922 = vmax.f32 %v781, 0.0
        %v923 = vmax.f32 %v783, 0.0
        %v924 = vmax.f32 %v786, 0.0
        %v925 = vmax.f32 %v788, 0.0
        %v926 = vmax.f32 %v791, 0.0
        %v927 = vmax.f32 %v793, 0.0
        %v928 = vmax.f32 %v796, 0.0
        %v929 = vmax.f32 %v798, 0.0
        %v930 = vmax.f32 %v801, 0.0
        %v931 = vmax.f32 %v803, 0.0
        %v932 = vmax.f32 %v806, 0.0
        %v933 = vmax.f32 %v808, 0.0
        %v934 = vmax.f32 %v811, 0.0
        %v935 = vmax.f32 %v813, 0.0
        %v936 = vmax.f32 %v816, 0.0
        %v937 = vmax.f32 %v818, 0.0
        %v938 = vmax.f32 %v821, 0.0
        %v939 = vmax.f32 %v823, 0.0
        %v940 = vmax.f32 %v826, 0.0
        %v941 = vmax.f32 %v828, 0.0
        %v942 = vmax.f32 %v831, 0.0
        %v943 = vmax.f32 %v833, 0.0
        %v944 = vmax.f32 %v836, 0.0
        %v945 = vmax.f32 %v838, 0.0
        %v946 = vmax.f32 %v841, 0.0
        %v947 = vmax.f32 %v843, 0.0
        %v948 = vmax.f32 %v846, 0.0
        %v949 = vmax.f32 %v848, 0.0
        %v950 = vmax.f32 %v851, 0.0
        %v951 = vmax.f32 %v853, 0.0
        %v952 = vmax.f32 %v856, 0.0
        %v953 = vmax.f32 %v858, 0.0
        %v954 = vmax.f32 %v861, 0.0
        %v955 = vmax.f32 %v863, 0.0
        %v956 = vmax.f32 %v866, 0.0
        %v957 = vmax.f32 %v868, 0.0
        %v958 = vmax.f32 %v871, 0.0
        %v959 = vmax.f32 %v873, 0.0
        %v960 = vmax.f32 %v876, 0.0
        %v961 = vmax.f32 %v878, 0.0
        %v962 = vmax.f32 %v881, 0.0
        %v963 = vmax.f32 %v883, 0.0
        %v964 = vmax.f32 %v886, 0.0
        %v965 = vmax.f32 %v888, 0.0
        %v966 = vmax.f32 %v891, 0.0
        %v967 = vmax.f32 %v893, 0.0
        %v968 = vmax.f32 %v896, 0.0
        %v969 = vmax.f32 %v898, 0.0
        %v970 = vmax.f32 %v901, 0.0
        %v971 = vmax.f32 %v903, 0.0
        %v972 = vmax.f32 %v906, 0.0
        %v973 = vmax.f32 %v908, 0.0
        %v974 = vpack.c.bf16 %v911, %v910
        %v975 = vpack.c.bf16 %v913, %v912
        %v976 = vpack.c.bf16 %v915, %v914
        %v977 = vpack.c.bf16 %v917, %v916
        %v978 = vpack.c.bf16 %v919, %v918
        %v979 = vpack.c.bf16 %v921, %v920
        %v980 = vpack.c.bf16 %v923, %v922
        %v981 = vpack.c.bf16 %v925, %v924
        %v982 = vpack.c.bf16 %v927, %v926
        %v983 = vpack.c.bf16 %v929, %v928
        %v984 = vpack.c.bf16 %v931, %v930
        %v985 = vpack.c.bf16 %v933, %v932
        %v986 = vpack.c.bf16 %v935, %v934
        %v987 = vpack.c.bf16 %v937, %v936
        %v988 = vpack.c.bf16 %v939, %v938
        %v989 = vpack.c.bf16 %v941, %v940
        %v990 = vpack.c.bf16 %v943, %v942
        %v991 = vpack.c.bf16 %v945, %v944
        %v992 = vpack.c.bf16 %v947, %v946
        %v993 = vpack.c.bf16 %v949, %v948
        %v994 = vpack.c.bf16 %v951, %v950
        %v995 = vpack.c.bf16 %v953, %v952
        %v996 = vpack.c.bf16 %v955, %v954
        %v997 = vpack.c.bf16 %v957, %v956
        %v998 = vpack.c.bf16 %v959, %v958
        %v999 = vpack.c.bf16 %v961, %v960
        %v1000 = vpack.c.bf16 %v963, %v962
        %v1001 = vpack.c.bf16 %v965, %v964
        %v1002 = vpack.c.bf16 %v967, %v966
        %v1003 = vpack.c.bf16 %v969, %v968
        %v1004 = vpack.c.bf16 %v971, %v970
        %v1005 = vpack.c.bf16 %v973, %v972
        %v1006 = vld [vmem:[%s3] sm:$0xf]
        %v1007 = vld [vmem:[%s3 + $0x4] sm:$0xf]
        %v1008 = vld [vmem:[%s3 + $0x8] sm:$0xf]
        %v1009 = vld [vmem:[%s3 + $0xc] sm:$0xf]
        %v1010 = vld [vmem:[%s3 + $0x10] sm:$0xf]
        %v1011 = vld [vmem:[%s3 + $0x14] sm:$0xf]
        %v1012 = vld [vmem:[%s3 + $0x18] sm:$0xf]
        %v1013 = vld [vmem:[%s3 + $0x1c] sm:$0xf]
        %v1014 = vld [vmem:[%s3 + $0x20] sm:$0xf]
        %v1015 = vld [vmem:[%s3 + $0x24] sm:$0xf]
        %v1016 = vld [vmem:[%s3 + $0x28] sm:$0xf]
        %v1017 = vld [vmem:[%s3 + $0x2c] sm:$0xf]
        %v1018 = vld [vmem:[%s3 + $0x30] sm:$0xf]
        %v1019 = vld [vmem:[%s3 + $0x34] sm:$0xf]
        %v1020 = vld [vmem:[%s3 + $0x38] sm:$0xf]
        %v1021 = vld [vmem:[%s3 + $0x3c] sm:$0xf]
        %v1022 = vld [vmem:[%s4] sm:$0x1]
        %v1024 = vperm.slane %v1022, 0
        %v1042 = vunpack.c.l.b16 %v1006
        %v1043 = vunpack.c.l.b16 %v1007
        %v1044 = vunpack.c.l.b16 %v1008
        %v1045 = vunpack.c.l.b16 %v1009
        %v1046 = vunpack.c.l.b16 %v1010
        %v1047 = vunpack.c.l.b16 %v1011
        %v1048 = vunpack.c.l.b16 %v1012
        %v1049 = vunpack.c.l.b16 %v1013
        %v1050 = vunpack.c.l.b16 %v1014
        %v1051 = vunpack.c.l.b16 %v1015
        %v1052 = vunpack.c.l.b16 %v1016
        %v1053 = vunpack.c.l.b16 %v1017
        %v1054 = vunpack.c.l.b16 %v1018
        %v1055 = vunpack.c.l.b16 %v1019
        %v1056 = vunpack.c.l.b16 %v1020
        %v1057 = vunpack.c.l.b16 %v1021
        %v1058 = vpack.c.b16 %v1043, %v1042
        %v1059 = vpack.c.b16 %v1045, %v1044
        %v1060 = vpack.c.b16 %v1047, %v1046
        %v1061 = vpack.c.b16 %v1049, %v1048
        %v1062 = vpack.c.b16 %v1051, %v1050
        %v1063 = vpack.c.b16 %v1053, %v1052
        %v1064 = vpack.c.b16 %v1055, %v1054
        %v1065 = vpack.c.b16 %v1057, %v1056
        %1074 = vmatpush.bf16.msra.mxu0 %v1065
        %1075 = vmatpush.bf16.msra.mxu0 %v1064
        %1076 = vmatpush.bf16.msra.mxu0 %v1063
        %1077 = vmatpush.bf16.msra.mxu0 %v1062
        %1078 = vmatpush.bf16.msra.mxu0 %v1061
        %1079 = vmatpush.bf16.msra.mxu0 %v1060
        %1080 = vmatpush.bf16.msra.mxu0 %v1059
        %1081 = vmatpush.bf16.msra.mxu0 %v1058
        %1082 = vmatmul.bf16.gmra.mxu0 %v974
        %v1083 = vpop.f32.mrf.mxu0
        %v1084 = vadd.f32 %v1024, %v1083
        %v1085 = vpop.f32.mrf.mxu0
        %v1086 = vadd.f32 %v1024, %v1085
        %1087 = vmatmul.bf16.gmra.mxu0 %v975
        %v1088 = vpop.f32.mrf.mxu0
        %v1089 = vadd.f32 %v1024, %v1088
        %v1090 = vpop.f32.mrf.mxu0
        %v1091 = vadd.f32 %v1024, %v1090
        %1092 = vmatmul.bf16.gmra.mxu0 %v976
        %v1093 = vpop.f32.mrf.mxu0
        %v1094 = vadd.f32 %v1024, %v1093
        %v1095 = vpop.f32.mrf.mxu0
        %v1096 = vadd.f32 %v1024, %v1095
        %1097 = vmatmul.bf16.gmra.mxu0 %v977
        %v1098 = vpop.f32.mrf.mxu0
        %v1099 = vadd.f32 %v1024, %v1098
        %v1100 = vpop.f32.mrf.mxu0
        %v1101 = vadd.f32 %v1024, %v1100
        %1102 = vmatmul.bf16.gmra.mxu0 %v978
        %v1103 = vpop.f32.mrf.mxu0
        %v1104 = vadd.f32 %v1024, %v1103
        %v1105 = vpop.f32.mrf.mxu0
        %v1106 = vadd.f32 %v1024, %v1105
        %1107 = vmatmul.bf16.gmra.mxu0 %v979
        %v1108 = vpop.f32.mrf.mxu0
        %v1109 = vadd.f32 %v1024, %v1108
        %v1110 = vpop.f32.mrf.mxu0
        %v1111 = vadd.f32 %v1024, %v1110
        %1112 = vmatmul.bf16.gmra.mxu0 %v980
        %v1113 = vpop.f32.mrf.mxu0
        %v1114 = vadd.f32 %v1024, %v1113
        %v1115 = vpop.f32.mrf.mxu0
        %v1116 = vadd.f32 %v1024, %v1115
        %1117 = vmatmul.bf16.gmra.mxu0 %v981
        %v1118 = vpop.f32.mrf.mxu0
        %v1119 = vadd.f32 %v1024, %v1118
        %v1120 = vpop.f32.mrf.mxu0
        %v1121 = vadd.f32 %v1024, %v1120
        %1122 = vmatmul.bf16.gmra.mxu0 %v982
        %v1123 = vpop.f32.mrf.mxu0
        %v1124 = vadd.f32 %v1024, %v1123
        %v1125 = vpop.f32.mrf.mxu0
        %v1126 = vadd.f32 %v1024, %v1125
        %1127 = vmatmul.bf16.gmra.mxu0 %v983
        %v1128 = vpop.f32.mrf.mxu0
        %v1129 = vadd.f32 %v1024, %v1128
        %v1130 = vpop.f32.mrf.mxu0
        %v1131 = vadd.f32 %v1024, %v1130
        %1132 = vmatmul.bf16.gmra.mxu0 %v984
        %v1133 = vpop.f32.mrf.mxu0
        %v1134 = vadd.f32 %v1024, %v1133
        %v1135 = vpop.f32.mrf.mxu0
        %v1136 = vadd.f32 %v1024, %v1135
        %1137 = vmatmul.bf16.gmra.mxu0 %v985
        %v1138 = vpop.f32.mrf.mxu0
        %v1139 = vadd.f32 %v1024, %v1138
        %v1140 = vpop.f32.mrf.mxu0
        %v1141 = vadd.f32 %v1024, %v1140
        %1142 = vmatmul.bf16.gmra.mxu0 %v986
        %v1143 = vpop.f32.mrf.mxu0
        %v1144 = vadd.f32 %v1024, %v1143
        %v1145 = vpop.f32.mrf.mxu0
        %v1146 = vadd.f32 %v1024, %v1145
        %1147 = vmatmul.bf16.gmra.mxu0 %v987
        %v1148 = vpop.f32.mrf.mxu0
        %v1149 = vadd.f32 %v1024, %v1148
        %v1150 = vpop.f32.mrf.mxu0
        %v1151 = vadd.f32 %v1024, %v1150
        %1152 = vmatmul.bf16.gmra.mxu0 %v988
        %v1153 = vpop.f32.mrf.mxu0
        %v1154 = vadd.f32 %v1024, %v1153
        %v1155 = vpop.f32.mrf.mxu0
        %v1156 = vadd.f32 %v1024, %v1155
        %1157 = vmatmul.bf16.gmra.mxu0 %v989
        %v1158 = vpop.f32.mrf.mxu0
        %v1159 = vadd.f32 %v1024, %v1158
        %v1160 = vpop.f32.mrf.mxu0
        %v1161 = vadd.f32 %v1024, %v1160
        %1162 = vmatmul.bf16.gmra.mxu0 %v990
        %v1163 = vpop.f32.mrf.mxu0
        %v1164 = vadd.f32 %v1024, %v1163
        %v1165 = vpop.f32.mrf.mxu0
        %v1166 = vadd.f32 %v1024, %v1165
        %1167 = vmatmul.bf16.gmra.mxu0 %v991
        %v1168 = vpop.f32.mrf.mxu0
        %v1169 = vadd.f32 %v1024, %v1168
        %v1170 = vpop.f32.mrf.mxu0
        %v1171 = vadd.f32 %v1024, %v1170
        %1172 = vmatmul.bf16.gmra.mxu0 %v992
        %v1173 = vpop.f32.mrf.mxu0
        %v1174 = vadd.f32 %v1024, %v1173
        %v1175 = vpop.f32.mrf.mxu0
        %v1176 = vadd.f32 %v1024, %v1175
        %1177 = vmatmul.bf16.gmra.mxu0 %v993
        %v1178 = vpop.f32.mrf.mxu0
        %v1179 = vadd.f32 %v1024, %v1178
        %v1180 = vpop.f32.mrf.mxu0
        %v1181 = vadd.f32 %v1024, %v1180
        %1182 = vmatmul.bf16.gmra.mxu0 %v994
        %v1183 = vpop.f32.mrf.mxu0
        %v1184 = vadd.f32 %v1024, %v1183
        %v1185 = vpop.f32.mrf.mxu0
        %v1186 = vadd.f32 %v1024, %v1185
        %1187 = vmatmul.bf16.gmra.mxu0 %v995
        %v1188 = vpop.f32.mrf.mxu0
        %v1189 = vadd.f32 %v1024, %v1188
        %v1190 = vpop.f32.mrf.mxu0
        %v1191 = vadd.f32 %v1024, %v1190
        %1192 = vmatmul.bf16.gmra.mxu0 %v996
        %v1193 = vpop.f32.mrf.mxu0
        %v1194 = vadd.f32 %v1024, %v1193
        %v1195 = vpop.f32.mrf.mxu0
        %v1196 = vadd.f32 %v1024, %v1195
        %1197 = vmatmul.bf16.gmra.mxu0 %v997
        %v1198 = vpop.f32.mrf.mxu0
        %v1199 = vadd.f32 %v1024, %v1198
        %v1200 = vpop.f32.mrf.mxu0
        %v1201 = vadd.f32 %v1024, %v1200
        %1202 = vmatmul.bf16.gmra.mxu0 %v998
        %v1203 = vpop.f32.mrf.mxu0
        %v1204 = vadd.f32 %v1024, %v1203
        %v1205 = vpop.f32.mrf.mxu0
        %v1206 = vadd.f32 %v1024, %v1205
        %1207 = vmatmul.bf16.gmra.mxu0 %v999
        %v1208 = vpop.f32.mrf.mxu0
        %v1209 = vadd.f32 %v1024, %v1208
        %v1210 = vpop.f32.mrf.mxu0
        %v1211 = vadd.f32 %v1024, %v1210
        %1212 = vmatmul.bf16.gmra.mxu0 %v1000
        %v1213 = vpop.f32.mrf.mxu0
        %v1214 = vadd.f32 %v1024, %v1213
        %v1215 = vpop.f32.mrf.mxu0
        %v1216 = vadd.f32 %v1024, %v1215
        %1217 = vmatmul.bf16.gmra.mxu0 %v1001
        %v1218 = vpop.f32.mrf.mxu0
        %v1219 = vadd.f32 %v1024, %v1218
        %v1220 = vpop.f32.mrf.mxu0
        %v1221 = vadd.f32 %v1024, %v1220
        %1222 = vmatmul.bf16.gmra.mxu0 %v1002
        %v1223 = vpop.f32.mrf.mxu0
        %v1224 = vadd.f32 %v1024, %v1223
        %v1225 = vpop.f32.mrf.mxu0
        %v1226 = vadd.f32 %v1024, %v1225
        %1227 = vmatmul.bf16.gmra.mxu0 %v1003
        %v1228 = vpop.f32.mrf.mxu0
        %v1229 = vadd.f32 %v1024, %v1228
        %v1230 = vpop.f32.mrf.mxu0
        %v1231 = vadd.f32 %v1024, %v1230
        %1232 = vmatmul.bf16.gmra.mxu0 %v1004
        %v1233 = vpop.f32.mrf.mxu0
        %v1234 = vadd.f32 %v1024, %v1233
        %v1235 = vpop.f32.mrf.mxu0
        %v1236 = vadd.f32 %v1024, %v1235
        %1237 = vmatmul.bf16.gmra.mxu0 %v1005
        %v1238 = vpop.f32.mrf.mxu0
        %v1239 = vadd.f32 %v1024, %v1238
        %v1240 = vpop.f32.mrf.mxu0
        %v1241 = vadd.f32 %v1024, %v1240
        %1242 = vdwg.mxu0
        %1243 = vst [vmem:[%s245] sm:$0xff] %v1084
        %1244 = vst [vmem:[%s245 + $0x8] sm:$0xff] %v1086
        %1245 = vst [vmem:[%s245 + $0x10] sm:$0xff] %v1089
        %1246 = vst [vmem:[%s245 + $0x18] sm:$0xff] %v1091
        %1247 = vst [vmem:[%s245 + $0x20] sm:$0xff] %v1094
        %1248 = vst [vmem:[%s245 + $0x28] sm:$0xff] %v1096
        %1249 = vst [vmem:[%s245 + $0x30] sm:$0xff] %v1099
        %1250 = vst [vmem:[%s245 + $0x38] sm:$0xff] %v1101
        %1251 = vst [vmem:[%s245 + $0x40] sm:$0xff] %v1104
        %1252 = vst [vmem:[%s245 + $0x48] sm:$0xff] %v1106
        %1253 = vst [vmem:[%s245 + $0x50] sm:$0xff] %v1109
        %1254 = vst [vmem:[%s245 + $0x58] sm:$0xff] %v1111
        %1255 = vst [vmem:[%s245 + $0x60] sm:$0xff] %v1114
        %1256 = vst [vmem:[%s245 + $0x68] sm:$0xff] %v1116
        %1257 = vst [vmem:[%s245 + $0x70] sm:$0xff] %v1119
        %1258 = vst [vmem:[%s245 + $0x78] sm:$0xff] %v1121
        %1259 = vst [vmem:[%s245 + $0x80] sm:$0xff] %v1124
        %1260 = vst [vmem:[%s245 + $0x88] sm:$0xff] %v1126
        %1261 = vst [vmem:[%s245 + $0x90] sm:$0xff] %v1129
        %1262 = vst [vmem:[%s245 + $0x98] sm:$0xff] %v1131
        %1263 = vst [vmem:[%s245 + $0xa0] sm:$0xff] %v1134
        %1264 = vst [vmem:[%s245 + $0xa8] sm:$0xff] %v1136
        %1265 = vst [vmem:[%s245 + $0xb0] sm:$0xff] %v1139
        %1266 = vst [vmem:[%s245 + $0xb8] sm:$0xff] %v1141
        %1267 = vst [vmem:[%s245 + $0xc0] sm:$0xff] %v1144
        %1268 = vst [vmem:[%s245 + $0xc8] sm:$0xff] %v1146
        %1269 = vst [vmem:[%s245 + $0xd0] sm:$0xff] %v1149
        %1270 = vst [vmem:[%s245 + $0xd8] sm:$0xff] %v1151
        %1271 = vst [vmem:[%s245 + $0xe0] sm:$0xff] %v1154
        %1272 = vst [vmem:[%s245 + $0xe8] sm:$0xff] %v1156
        %1273 = vst [vmem:[%s245 + $0xf0] sm:$0xff] %v1159
        %1274 = vst [vmem:[%s245 + $0xf8] sm:$0xff] %v1161
        %1275 = vst [vmem:[%s245 + $0x100] sm:$0xff] %v1164
        %1276 = vst [vmem:[%s245 + $0x108] sm:$0xff] %v1166
        %1277 = vst [vmem:[%s245 + $0x110] sm:$0xff] %v1169
        %1278 = vst [vmem:[%s245 + $0x118] sm:$0xff] %v1171
        %1279 = vst [vmem:[%s245 + $0x120] sm:$0xff] %v1174
        %1280 = vst [vmem:[%s245 + $0x128] sm:$0xff] %v1176
        %1281 = vst [vmem:[%s245 + $0x130] sm:$0xff] %v1179
        %1282 = vst [vmem:[%s245 + $0x138] sm:$0xff] %v1181
        %1283 = vst [vmem:[%s245 + $0x140] sm:$0xff] %v1184
        %1284 = vst [vmem:[%s245 + $0x148] sm:$0xff] %v1186
        %1285 = vst [vmem:[%s245 + $0x150] sm:$0xff] %v1189
        %1286 = vst [vmem:[%s245 + $0x158] sm:$0xff] %v1191
        %1287 = vst [vmem:[%s245 + $0x160] sm:$0xff] %v1194
        %1288 = vst [vmem:[%s245 + $0x168] sm:$0xff] %v1196
        %1289 = vst [vmem:[%s245 + $0x170] sm:$0xff] %v1199
        %1290 = vst [vmem:[%s245 + $0x178] sm:$0xff] %v1201
        %1291 = vst [vmem:[%s245 + $0x180] sm:$0xff] %v1204
        %1292 = vst [vmem:[%s245 + $0x188] sm:$0xff] %v1206
        %1293 = vst [vmem:[%s245 + $0x190] sm:$0xff] %v1209
        %1294 = vst [vmem:[%s245 + $0x198] sm:$0xff] %v1211
        %1295 = vst [vmem:[%s245 + $0x1a0] sm:$0xff] %v1214
        %1296 = vst [vmem:[%s245 + $0x1a8] sm:$0xff] %v1216
        %1297 = vst [vmem:[%s245 + $0x1b0] sm:$0xff] %v1219
        %1298 = vst [vmem:[%s245 + $0x1b8] sm:$0xff] %v1221
        %1299 = vst [vmem:[%s245 + $0x1c0] sm:$0xff] %v1224
        %1300 = vst [vmem:[%s245 + $0x1c8] sm:$0xff] %v1226
        %1301 = vst [vmem:[%s245 + $0x1d0] sm:$0xff] %v1229
        %1302 = vst [vmem:[%s245 + $0x1d8] sm:$0xff] %v1231
        %1303 = vst [vmem:[%s245 + $0x1e0] sm:$0xff] %v1234
        %1304 = vst [vmem:[%s245 + $0x1e8] sm:$0xff] %v1236
        %1305 = vst [vmem:[%s245 + $0x1f0] sm:$0xff] %v1239
        %1306 = vst [vmem:[%s245 + $0x1f8] sm:$0xff] %v1241
        %s1307 = sand.u32 %s140, 1
        %s1308 = scalar_lea.sflag [#allocation4], %s1307
        %s1309 = sand.u32 %s140, 1
        %s1310 = smul.addr %s1309, 512
        %s1311 = scalar_lea.vmem [#allocation5], %s1310
        // Predicated region
        $region45: #{ffn_forward.1} parent=39 // pred_check
          %p1312 = pneg %p150
        $region46: #{ffn_forward.1} parent=39 // pred_check_branch
          %1314 = sbr.rel (%p1312) target = $region48
        $region47: #{ffn_forward.1} parent=39 // pred_region
          %s1315 = smul.u32 64, %s22
          %1317 = vsyncadd %s1308, 0
          %s1318 = smul.addr %s1315, 8
          %s1319 = scalar_lea.hbm %s5, %s1318
          %s1320 = sshll.u32 %s1311, 4
          %s1321 = int_to_ptr.vmem [resolvable:$true] %s1320
          %s1322 = sshll.u32 %s1319, 4
          %s1323 = int_to_ptr.hbm [resolvable:$true] %s1322
          %1328 = dma.vmem_to_hbm [thread:$0]  %s1321, 8192, %s1323, %s1308, 128, 128, 8
        $region48: #{ffn_forward.1} parent=39 // pred_fallthru
          _
      $region40: #{ffn_forward.1} parent=5 // pred_fallthru
        _
      %p1329 = scmp.le.s32.totalorder 2, %s17
      // Predicated region
      $region49: #{ffn_forward.1} parent=5 // pred_check
        %p1330 = pneg %p1329
      $region50: #{ffn_forward.1} parent=5 // pred_check_branch
        %1332 = sbr.rel (%p1330) target = $region52
      $region51: #{ffn_forward.1} parent=5 // pred_region
        %s1333 = ssub.s32 %s17, 2
        // Predicated region
        $region53: #{ffn_forward.1} parent=51 // pred_check
          %p1334 = pneg %p156
        $region54: #{ffn_forward.1} parent=51 // pred_check_branch
          %1336 = sbr.rel (%p1334) target = $region56
        $region55: #{ffn_forward.1} parent=51 // pred_region
          %s1337 = sand.u32 %s141, 1
          %s1338 = scalar_lea.sflag [#allocation4], %s1337
          %s1339 = sand.u32 %s141, 1
          %s1340 = smul.addr %s1339, 512
          %s1341 = scalar_lea.vmem [#allocation5], %s1340
          %1343 = dma.done %s1338, 8192
        $region56: #{ffn_forward.1} parent=51 // pred_fallthru
          _
      $region52: #{ffn_forward.1} parent=5 // pred_fallthru
        _
    $region6: #{ffn_forward.1} parent=1 // loop_footer
      %s21 = sadd.s32 1, %s17
    $region7: #{ffn_forward.1} parent=1 // loop_footer_branch
      %16 = sbr.rel target = $region3
    $region8: #{ffn_forward.1} parent=1 // loop_exit
      _
    %1344 = vsyncpa [#allocation3], 1
    %s1345 = scalar_lea.sflag [#allocation3], 1
    %1346 = vsyncpa %s1345, 1
    %1347 = vsyncpa [#allocation4], 1
    %s1348 = scalar_lea.sflag [#allocation4], 1
    %1349 = vsyncpa %s1348, 1

</llo_original>
